<compile_context>
chip_gen: v5e
topology: v5e:2x2
jax: 0.10.0
libtpu: 0.0.40
codegen_flags: <defaults>
</compile_context>

<pallas_src>
import jax
import jax.numpy as jnp
from jax.experimental import pallas as pl
from jax.experimental.pallas import tpu as pltpu

LANE = 128
NEG_PAD = -1e30   # bias for padded output lanes: drops out of log-softmax naturally


def _round_up(x, m):
    return ((x + m - 1) // m) * m


def _pad2(a, rows, cols, value=0.0):
    return jnp.pad(a, ((0, rows - a.shape[0]), (0, cols - a.shape[1])),
                   constant_values=value)


def _log_softmax_lane_padded(logits):
    """LogSoftmax over the last axis.  Padded lanes carry a ~-1e30 bias, so they
    drop out of max/exp without any iota/where masking; their outputs are garbage
    and must be sliced off by the caller."""
    m = jnp.max(logits, axis=-1, keepdims=True)
    shifted = logits - m
    denom = jnp.sum(jnp.exp(shifted), axis=-1, keepdims=True)
    return shifted - jnp.log(denom)


# ---------------------------------------------------------------------------
# Kernels
# ---------------------------------------------------------------------------
def make_step_kernel(with_perturb):
    """Single-step kernel: full i2h / i2o / o2o / log_softmax for one time step."""
    f32 = jnp.float32

    def core(xemb_h, hid_h, xemb_o, hid_o,
             wi2h_x_ref, wi2h_h_ref, bi2h_ref,
             wi2o_x_ref, wi2o_h_ref, bi2o_ref,
             wo2o_h_ref, wo2o_o_ref, bo2o_ref,
             out_ref, newhid_ref):
        # hidden = i2h(cat(x, hidden))
        new_hidden = (jnp.dot(xemb_h, wi2h_x_ref[...], preferred_element_type=f32)
                      + jnp.dot(hid_h, wi2h_h_ref[...], preferred_element_type=f32)
                      + bi2h_ref[...])
        # output = i2o(cat(x, hidden))
        out1 = (jnp.dot(xemb_o, wi2o_x_ref[...], preferred_element_type=f32)
                + jnp.dot(hid_o, wi2o_h_ref[...], preferred_element_type=f32)
                + bi2o_ref[...])
        # output = o2o(cat(hidden_new, output))
        out2 = (jnp.dot(new_hidden, wo2o_h_ref[...], preferred_element_type=f32)
                + jnp.dot(out1, wo2o_o_ref[...], preferred_element_type=f32)
                + bo2o_ref[...])
        out_ref[...] = _log_softmax_lane_padded(out2)
        newhid_ref[...] = new_hidden

    if with_perturb:
        def kernel(xemb_ref, hid_ref, ph_x_ref, ph_h_ref, po_x_ref, po_h_ref,
                   wi2h_x_ref, wi2h_h_ref, bi2h_ref,
                   wi2o_x_ref, wi2o_h_ref, bi2o_ref,
                   wo2o_h_ref, wo2o_o_ref, bo2o_ref,
                   out_ref, newhid_ref):
            xemb = xemb_ref[...]
            hid = hid_ref[...]
            core(xemb + ph_x_ref[...], hid + ph_h_ref[...],
                 xemb + po_x_ref[...], hid + po_h_ref[...],
                 wi2h_x_ref, wi2h_h_ref, bi2h_ref,
                 wi2o_x_ref, wi2o_h_ref, bi2o_ref,
                 wo2o_h_ref, wo2o_o_ref, bo2o_ref,
                 out_ref, newhid_ref)
    else:
        def kernel(xemb_ref, hid_ref,
                   wi2h_x_ref, wi2h_h_ref, bi2h_ref,
                   wi2o_x_ref, wi2o_h_ref, bi2o_ref,
                   wo2o_h_ref, wo2o_o_ref, bo2o_ref,
                   out_ref, newhid_ref):
            xemb = xemb_ref[...]
            hid = hid_ref[...]
            core(xemb, hid, xemb, hid,
                 wi2h_x_ref, wi2h_h_ref, bi2h_ref,
                 wi2o_x_ref, wi2o_h_ref, bi2o_ref,
                 wo2o_h_ref, wo2o_o_ref, bo2o_ref,
                 out_ref, newhid_ref)

    return kernel


def fused_sequence_kernel(xemb_ref, hid0_ref,
                          wi2h_x_ref, wi2h_h_ref, bi2h_ref,
                          wi2o_x_ref, wi2o_h_ref, bi2o_ref,
                          wo2o_h_ref, wo2o_o_ref, bo2o_ref,
                          out_ref, finalhid_ref,
                          hid_scr):
    """Whole (T, B) sequence in a single kernel.

    Phase 1: serial i2h recurrence, T static so fully unrolled at trace time
             (equivalent to lax.fori_loop(0, T, ..., unroll=True)); hiddens are
             written into a (T+1, B, Hp) VMEM scratch (row t = hidden ENTERING
             step t, row t+1 = hidden PRODUCED by step t).
    Phase 2: batched (T*B, .) i2o / o2o / log-softmax with one lane-dense store.
    """
    f32 = jnp.float32
    T, B, Hp = xemb_ref.shape
    Op = out_ref.shape[-1]

    # ---- Phase 1: recurrent i2h chain -------------------------------------
    wi2h_x = wi2h_x_ref[...]   # hoisted: VMEM-resident weights loaded once
    wi2h_h = wi2h_h_ref[...]
    bi2h = bi2h_ref[...]
    hid = hid0_ref[...]
    hid_scr[0] = hid
    for t in range(T):
        hid = (jnp.dot(xemb_ref[t], wi2h_x, preferred_element_type=f32)
               + jnp.dot(hid, wi2h_h, preferred_element_type=f32)
               + bi2h)
        hid_scr[t + 1] = hid
    finalhid_ref[...] = hid

    # ---- Phase 2: batched non-recurrent work over all T*B rows ------------
    TB = T * B
    xe = xemb_ref[...].reshape(TB, Hp)
    hin = hid_scr[pl.ds(0, T)].reshape(TB, Hp)    # hidden entering each step
    hnew = hid_scr[pl.ds(1, T)].reshape(TB, Hp)   # hidden produced by each step
    out1 = (jnp.dot(xe, wi2o_x_ref[...], preferred_element_type=f32)
            + jnp.dot(hin, wi2o_h_ref[...], preferred_element_type=f32)
            + bi2o_ref[...])
    out2 = (jnp.dot(hnew, wo2o_h_ref[...], preferred_element_type=f32)
            + jnp.dot(out1, wo2o_o_ref[...], preferred_element_type=f32)
            + bo2o_ref[...])
    out_ref[...] = _log_softmax_lane_padded(out2).reshape(T, B, Op)
    # TODO(synk): once T*B stops fitting comfortably in VMEM (~4-8K rows on v5e/v6e,
    #             ~2K rows on v7x's 64 MiB VMEM), split phase 2 out again and tile it
    #             over rows with a "parallel" grid (megacore on v7x).


# ---------------------------------------------------------------------------
# Parameter preparation (pre-transpose, pre-split, lane padding)
# ---------------------------------------------------------------------------
def prepare_params(params):
    emb = params["embedding"]
    w_i2h, b_i2h = params["w_i2h"], params["b_i2h"]
    w_i2o, b_i2o = params["w_i2o"], params["b_i2o"]
    w_o2o, b_o2o = params["w_o2o"], params["b_o2o"]

    V, H = emb.shape
    O = w_i2o.shape[0]
    Hp = _round_up(H, LANE)
    Op = _round_up(O, LANE)

    wi2h_t = w_i2h.T      # (2H, H)
    wi2o_t = w_i2o.T      # (2H, O)
    wo2o_t = w_o2o.T      # (H+O, O)

    return {
        "H": H, "O": O, "Hp": Hp, "Op": Op,
        "emb": jnp.pad(emb, ((0, 0), (0, Hp - H))),
        # zero pads keep padded hidden lanes exactly 0 through the recurrence
        "wi2h_x": _pad2(wi2h_t[:H], Hp, Hp),
        "wi2h_h": _pad2(wi2h_t[H:], Hp, Hp),
        "bi2h": _pad2(b_i2h.reshape(1, H), 1, Hp),
        "wi2o_x": _pad2(wi2o_t[:H], Hp, Op),
        "wi2o_h": _pad2(wi2o_t[H:], Hp, Op),
        "bi2o": _pad2(b_i2o.reshape(1, O), 1, Op),
        "wo2o_h": _pad2(wo2o_t[:H], Hp, Op),
        "wo2o_o": _pad2(wo2o_t[H:], Op, Op),
        # -1e30 on padded o2o bias lanes -> mask-free log-softmax in the kernel
        "bo2o": _pad2(b_o2o.reshape(1, O), 1, Op, value=NEG_PAD),
    }


def hidden_from_padded(hidden_p, pparams):
    """Module-view (B, H) hidden from the lane-padded (B, Hp) carry."""
    return hidden_p[:, :pparams["H"]]


# ---------------------------------------------------------------------------
# Wrappers
# ---------------------------------------------------------------------------
def rnn_forward(x_idx, hidden, pparams, *, i2h_perturb=None, i2o_perturb=None):
    """One forward step, matching torch RNN.forward.

    x_idx:  (B,) int32 token indices
    hidden: (B, H) or lane-padded (B, Hp) float32 (padded carry is preferred:
            feed the returned hidden straight back without re-padding)
    returns (log_softmax output (B, O), new hidden (B, Hp); padded lanes are 0,
             slice with hidden_from_padded() at sequence boundaries).
    """
    H, O, Hp, Op = pparams["H"], pparams["O"], pparams["Hp"], pparams["Op"]
    B = x_idx.shape[0]

    x_emb = pparams["emb"][x_idx]                       # (B, Hp), gather in JAX glue
    if hidden.shape[1] == Hp:
        hid_p = hidden                                  # padded carry: no copy
    else:
        hid_p = jnp.pad(hidden, ((0, 0), (0, Hp - hidden.shape[1])))

    weights = (pparams["wi2h_x"], pparams["wi2h_h"], pparams["bi2h"],
               pparams["wi2o_x"], pparams["wi2o_h"], pparams["bi2o"],
               pparams["wo2o_h"], pparams["wo2o_o"], pparams["bo2o"])

    with_perturb = (i2h_perturb is not None) or (i2o_perturb is not None)
    if with_perturb:
        ph = jnp.zeros((B, 2 * H), jnp.float32) if i2h_perturb is None else i2h_perturb
        po = jnp.zeros((B, 2 * H), jnp.float32) if i2o_perturb is None else i2o_perturb
        pad = ((0, 0), (0, Hp - H))
        # Pre-split each (B, 2H) perturbation into lane-0-aligned x / hidden halves.
        args = (x_emb, hid_p,
                jnp.pad(ph[:, :H], pad), jnp.pad(ph[:, H:], pad),
                jnp.pad(po[:, :H], pad), jnp.pad(po[:, H:], pad)) + weights
    else:
        args = (x_emb, hid_p) + weights

    kernel = make_step_kernel(with_perturb)
    vmem = pl.BlockSpec(memory_space=pltpu.MemorySpace.VMEM)
    out_p, newhid_p = pl.pallas_call(
        kernel,
        out_shape=(jax.ShapeDtypeStruct((B, Op), jnp.float32),
                   jax.ShapeDtypeStruct((B, Hp), jnp.float32)),
        in_specs=[vmem] * len(args),
        out_specs=(vmem, vmem),
        input_output_aliases={1: 1},   # hidden in -> new hidden out (reuse buffer)
    )(*args)
    return out_p[:, :O], newhid_p


def rnn_forward_sequence(x_seq, hidden0, pparams):
    """Apply the RNN forward over a whole (T, B) token sequence (no perturbations).

    Returns (log_softmax outputs (T, B, O), final hidden (B, Hp) padded carry).
    The whole sequence runs in a single fused pallas_call.
    """
    H, O, Hp, Op = pparams["H"], pparams["O"], pparams["Hp"], pparams["Op"]
    T, B = x_seq.shape

    x_emb_seq = pparams["emb"][x_seq]                    # (T, B, Hp) gather in glue
    if hidden0.shape[1] == Hp:
        hid0_p = hidden0
    else:
        hid0_p = jnp.pad(hidden0, ((0, 0), (0, Hp - hidden0.shape[1])))

    vmem = pl.BlockSpec(memory_space=pltpu.MemorySpace.VMEM)
    out, finalhid = pl.pallas_call(
        fused_sequence_kernel,
        out_shape=(jax.ShapeDtypeStruct((T, B, Op), jnp.float32),
                   jax.ShapeDtypeStruct((B, Hp), jnp.float32)),
        in_specs=[vmem] * 11,
        out_specs=(vmem, vmem),
        scratch_shapes=[pltpu.VMEM((T + 1, B, Hp), jnp.float32)],
    )(x_emb_seq, hid0_p,
      pparams["wi2h_x"], pparams["wi2h_h"], pparams["bi2h"],
      pparams["wi2o_x"], pparams["wi2o_h"], pparams["bi2o"],
      pparams["wo2o_h"], pparams["wo2o_o"], pparams["bo2o"])
    return out[:, :, :O], finalhid


# ---------------------------------------------------------------------------
# Parameter init (mirrors torch module shapes/inits) and a pure-JAX reference
# ---------------------------------------------------------------------------
def init_params(key, input_size, hidden_size, output_size):
    H, O, V = hidden_size, output_size, input_size
    ks = jax.random.split(key, 7)

    def xavier(k, out_f, in_f, gain):
        bound = gain * (6.0 / (in_f + out_f)) ** 0.5
        return jax.random.uniform(k, (out_f, in_f), jnp.float32, -bound, bound)

    def linear_default(k, out_f, in_f):
        bound = 1.0 / (in_f ** 0.5)
        return jax.random.uniform(k, (out_f, in_f), jnp.float32, -bound, bound)

    def bias_default(k, out_f, in_f):
        bound = 1.0 / (in_f ** 0.5)
        return jax.random.uniform(k, (out_f,), jnp.float32, -bound, bound)

    return {
        "embedding": jax.random.normal(ks[0], (V, H), jnp.float32),
        "w_i2h": xavier(ks[1], H, 2 * H, gain=0.01),
        "b_i2h": bias_default(ks[2], H, 2 * H),
        "w_i2o": xavier(ks[3], O, 2 * H, gain=0.01),
        "b_i2o": bias_default(ks[4], O, 2 * H),
        "w_o2o": linear_default(ks[5], O, H + O),
        "b_o2o": bias_default(ks[6], O, H + O),
    }


def ref_forward(x_idx, hidden, params, i2h_perturb=None, i2o_perturb=None):
    x = params["embedding"][x_idx]
    ic = jnp.concatenate([x, hidden], axis=1)
    ic_h = ic if i2h_perturb is None else ic + i2h_perturb
    ic_o = ic if i2o_perturb is None else ic + i2o_perturb
    new_hidden = ic_h @ params["w_i2h"].T + params["b_i2h"]
    out = ic_o @ params["w_i2o"].T + params["b_i2o"]
    oc = jnp.concatenate([new_hidden, out], axis=1)
    out = oc @ params["w_o2o"].T + params["b_o2o"]
    return jax.nn.log_softmax(out, axis=1), new_hidden


# ---------------------------------------------------------------------------
if __name__ == "__main__":
    input_size = 16     # vocab size
    hidden_size = 32
    output_size = 64
    batch = 8
    seq_len = 8

    key = jax.random.PRNGKey(0)
    kp, kx, kx2, kseq, kph, kpo = jax.random.split(key, 6)
    params = init_params(kp, input_size, hidden_size, output_size)
    pparams = prepare_params(params)

    x_idx = jax.random.randint(kx, (batch,), 0, input_size, dtype=jnp.int32)
    x_idx2 = jax.random.randint(kx2, (batch,), 0, input_size, dtype=jnp.int32)
    hidden0 = jnp.zeros((batch, hidden_size), jnp.float32)   # init_hidden(n)

    # --- single step (no perturbation), padded hidden carried across steps ---
    step_fn = jax.jit(lambda x, h: rnn_forward(x, h, pparams))
    out1, hid_p1 = step_fn(x_idx, hidden0)       # (B,H) hidden -> padded once
    out2, hid_p2 = step_fn(x_idx2, hid_p1)       # padded carry fed straight back
    jax.block_until_ready((out1, out2, hid_p1, hid_p2))

    ref_out1, ref_h1 = ref_forward(x_idx, hidden0, params)
    ref_out2, ref_h2 = ref_forward(x_idx2, ref_h1, params)
    assert out1.shape == (batch, output_size)
    assert hid_p1.shape == (batch, pparams["Hp"])
    assert bool(jnp.allclose(jnp.sum(jnp.exp(out1), axis=1), 1.0, atol=1e-4))
    assert bool(jnp.allclose(out1, ref_out1, atol=2e-3, rtol=2e-3))
    assert bool(jnp.allclose(hidden_from_padded(hid_p1, pparams), ref_h1,
                             atol=2e-3, rtol=2e-3))
    assert bool(jnp.allclose(out2, ref_out2, atol=2e-3, rtol=2e-3))
    assert bool(jnp.allclose(hidden_from_padded(hid_p2, pparams), ref_h2,
                             atol=2e-3, rtol=2e-3))
    # padded hidden lanes stay exactly zero through the recurrence
    assert bool(jnp.all(hid_p2[:, hidden_size:] == 0.0))

    # --- single step, with perturbations ------------------------------------
    ph = 0.01 * jax.random.normal(kph, (batch, 2 * hidden_size), jnp.float32)
    po = 0.01 * jax.random.normal(kpo, (batch, 2 * hidden_size), jnp.float32)
    pstep_fn = jax.jit(lambda x, h, a, b:
                       rnn_forward(x, h, pparams, i2h_perturb=a, i2o_perturb=b))
    out_p, hid_pp = pstep_fn(x_idx, hidden0, ph, po)
    jax.block_until_ready((out_p, hid_pp))
    ref_out_p, ref_hid_p = ref_forward(x_idx, hidden0, params, ph, po)
    assert bool(jnp.allclose(out_p, ref_out_p, atol=2e-3, rtol=2e-3))
    assert bool(jnp.allclose(hidden_from_padded(hid_pp, pparams), ref_hid_p,
                             atol=2e-3, rtol=2e-3))

    # --- fused sequence (single pallas_call for all T steps) ----------------
    x_seq = jax.random.randint(kseq, (seq_len, batch), 0, input_size, dtype=jnp.int32)
    seq_fn = jax.jit(lambda xs, h: rnn_forward_sequence(xs, h, pparams))
    outs, final_hidden_p = seq_fn(x_seq, hidden0)
    jax.block_until_ready((outs, final_hidden_p))

    ref_h = hidden0
    ref_outs = []
    for t in range(seq_len):
        o_t, ref_h = ref_forward(x_seq[t], ref_h, params)
        ref_outs.append(o_t)
    ref_outs = jnp.stack(ref_outs)

    assert outs.shape == (seq_len, batch, output_size)
    assert final_hidden_p.shape == (batch, pparams["Hp"])
    assert bool(jnp.allclose(outs, ref_outs, atol=2e-3, rtol=2e-3))
    assert bool(jnp.allclose(hidden_from_padded(final_hidden_p, pparams), ref_h,
                             atol=2e-3, rtol=2e-3))

    print("KERNEL_OK")
</pallas_src>

<mosaic_0001>
module attributes {stable_mosaic.version = 11 : i64} {
  func.func @kernel(%arg0: memref<8x128xf32, #tpu.memory_space<vmem>>, %arg1: memref<8x128xf32, #tpu.memory_space<vmem>>, %arg2: memref<128x128xf32, #tpu.memory_space<vmem>>, %arg3: memref<128x128xf32, #tpu.memory_space<vmem>>, %arg4: memref<1x128xf32, #tpu.memory_space<vmem>>, %arg5: memref<128x128xf32, #tpu.memory_space<vmem>>, %arg6: memref<128x128xf32, #tpu.memory_space<vmem>>, %arg7: memref<1x128xf32, #tpu.memory_space<vmem>>, %arg8: memref<128x128xf32, #tpu.memory_space<vmem>>, %arg9: memref<128x128xf32, #tpu.memory_space<vmem>>, %arg10: memref<1x128xf32, #tpu.memory_space<vmem>>, %arg11: memref<8x128xf32, #tpu.memory_space<vmem>>, %arg12: memref<8x128xf32, #tpu.memory_space<vmem>>) attributes {dimension_semantics = [], scalar_prefetch = 0 : i64, scratch_operands = 0 : i64, tpu.core_type = #tpu.core_type<tc>} {
    %c0 = arith.constant 0 : index
    %c0_0 = arith.constant 0 : index
    %0 = vector.load %arg0[%c0, %c0_0] : memref<8x128xf32, #tpu.memory_space<vmem>>, vector<8x128xf32>
    %c0_1 = arith.constant 0 : index
    %c0_2 = arith.constant 0 : index
    %1 = vector.load %arg1[%c0_1, %c0_2] : memref<8x128xf32, #tpu.memory_space<vmem>>, vector<8x128xf32>
    %c0_3 = arith.constant 0 : index
    %c0_4 = arith.constant 0 : index
    %2 = vector.load %arg2[%c0_3, %c0_4] : memref<128x128xf32, #tpu.memory_space<vmem>>, vector<128x128xf32>
    %cst = arith.constant dense<0.000000e+00> : vector<8x128xf32>
    %3 = tpu.matmul %0, %2, %cst {dimension_numbers = #tpu.dot_dimension_numbers<[1], [0], [0], [1], [0, 0, 1, 1], [], []>} : vector<8x128xf32>, vector<128x128xf32>, vector<8x128xf32> -> vector<8x128xf32>
    %c0_5 = arith.constant 0 : index
    %c0_6 = arith.constant 0 : index
    %4 = vector.load %arg3[%c0_5, %c0_6] : memref<128x128xf32, #tpu.memory_space<vmem>>, vector<128x128xf32>
    %cst_7 = arith.constant dense<0.000000e+00> : vector<8x128xf32>
    %5 = tpu.matmul %1, %4, %cst_7 {dimension_numbers = #tpu.dot_dimension_numbers<[1], [0], [0], [1], [0, 0, 1, 1], [], []>} : vector<8x128xf32>, vector<128x128xf32>, vector<8x128xf32> -> vector<8x128xf32>
    %6 = arith.addf %3, %5 : vector<8x128xf32>
    %c0_8 = arith.constant 0 : index
    %c0_9 = arith.constant 0 : index
    %7 = vector.load %arg4[%c0_8, %c0_9] : memref<1x128xf32, #tpu.memory_space<vmem>>, vector<1x128xf32>
    %8 = vector.broadcast %7 : vector<1x128xf32> to vector<8x128xf32>
    %9 = arith.addf %6, %8 : vector<8x128xf32>
    %c0_10 = arith.constant 0 : index
    %c0_11 = arith.constant 0 : index
    %10 = vector.load %arg5[%c0_10, %c0_11] : memref<128x128xf32, #tpu.memory_space<vmem>>, vector<128x128xf32>
    %cst_12 = arith.constant dense<0.000000e+00> : vector<8x128xf32>
    %11 = tpu.matmul %0, %10, %cst_12 {dimension_numbers = #tpu.dot_dimension_numbers<[1], [0], [0], [1], [0, 0, 1, 1], [], []>} : vector<8x128xf32>, vector<128x128xf32>, vector<8x128xf32> -> vector<8x128xf32>
    %c0_13 = arith.constant 0 : index
    %c0_14 = arith.constant 0 : index
    %12 = vector.load %arg6[%c0_13, %c0_14] : memref<128x128xf32, #tpu.memory_space<vmem>>, vector<128x128xf32>
    %cst_15 = arith.constant dense<0.000000e+00> : vector<8x128xf32>
    %13 = tpu.matmul %1, %12, %cst_15 {dimension_numbers = #tpu.dot_dimension_numbers<[1], [0], [0], [1], [0, 0, 1, 1], [], []>} : vector<8x128xf32>, vector<128x128xf32>, vector<8x128xf32> -> vector<8x128xf32>
    %14 = arith.addf %11, %13 : vector<8x128xf32>
    %c0_16 = arith.constant 0 : index
    %c0_17 = arith.constant 0 : index
    %15 = vector.load %arg7[%c0_16, %c0_17] : memref<1x128xf32, #tpu.memory_space<vmem>>, vector<1x128xf32>
    %16 = vector.broadcast %15 : vector<1x128xf32> to vector<8x128xf32>
    %17 = arith.addf %14, %16 : vector<8x128xf32>
    %c0_18 = arith.constant 0 : index
    %c0_19 = arith.constant 0 : index
    %18 = vector.load %arg8[%c0_18, %c0_19] : memref<128x128xf32, #tpu.memory_space<vmem>>, vector<128x128xf32>
    %cst_20 = arith.constant dense<0.000000e+00> : vector<8x128xf32>
    %19 = tpu.matmul %9, %18, %cst_20 {dimension_numbers = #tpu.dot_dimension_numbers<[1], [0], [0], [1], [0, 0, 1, 1], [], []>} : vector<8x128xf32>, vector<128x128xf32>, vector<8x128xf32> -> vector<8x128xf32>
    %c0_21 = arith.constant 0 : index
    %c0_22 = arith.constant 0 : index
    %20 = vector.load %arg9[%c0_21, %c0_22] : memref<128x128xf32, #tpu.memory_space<vmem>>, vector<128x128xf32>
    %cst_23 = arith.constant dense<0.000000e+00> : vector<8x128xf32>
    %21 = tpu.matmul %17, %20, %cst_23 {dimension_numbers = #tpu.dot_dimension_numbers<[1], [0], [0], [1], [0, 0, 1, 1], [], []>} : vector<8x128xf32>, vector<128x128xf32>, vector<8x128xf32> -> vector<8x128xf32>
    %22 = arith.addf %19, %21 : vector<8x128xf32>
    %c0_24 = arith.constant 0 : index
    %c0_25 = arith.constant 0 : index
    %23 = vector.load %arg10[%c0_24, %c0_25] : memref<1x128xf32, #tpu.memory_space<vmem>>, vector<1x128xf32>
    %24 = vector.broadcast %23 : vector<1x128xf32> to vector<8x128xf32>
    %25 = arith.addf %22, %24 : vector<8x128xf32>
    %cst_26 = arith.constant dense<0xFF800000> : vector<8xf32>
    %26 = vector.multi_reduction <maximumf>, %25, %cst_26 [1] : vector<8x128xf32> to vector<8xf32>
    %27 = vector.shape_cast %26 : vector<8xf32> to vector<8x1xf32>
    %28 = vector.broadcast %27 : vector<8x1xf32> to vector<8x128xf32>
    %29 = arith.subf %25, %28 : vector<8x128xf32>
    %30 = math.exp %29 : vector<8x128xf32>
    %cst_27 = arith.constant dense<0.000000e+00> : vector<8xf32>
    %31 = vector.multi_reduction <add>, %30, %cst_27 [1] : vector<8x128xf32> to vector<8xf32>
    %32 = vector.shape_cast %31 : vector<8xf32> to vector<8x1xf32>
    %33 = math.log %32 : vector<8x1xf32>
    %34 = vector.broadcast %33 : vector<8x1xf32> to vector<8x128xf32>
    %35 = arith.subf %29, %34 : vector<8x128xf32>
    %c0_28 = arith.constant 0 : index
    %c0_29 = arith.constant 0 : index
    %36 = vector.load %arg11[%c0_28, %c0_29] : memref<8x128xf32, #tpu.memory_space<vmem>>, vector<8x128xf32>
    tpu.vector_store %arg11[%c0_28, %c0_29], %35 {strides = array<i32>} : memref<8x128xf32, #tpu.memory_space<vmem>>, vector<8x128xf32>,
    %c0_30 = arith.constant 0 : index
    %c0_31 = arith.constant 0 : index
    %37 = vector.load %arg12[%c0_30, %c0_31] : memref<8x128xf32, #tpu.memory_space<vmem>>, vector<8x128xf32>
    tpu.vector_store %arg12[%c0_30, %c0_31], %9 {strides = array<i32>} : memref<8x128xf32, #tpu.memory_space<vmem>>, vector<8x128xf32>,
    return
  }
}

</mosaic_0001>

<llo_original>
// kernel: _lambda_.1
$region0: #{_lambda_.1}
  #allocation0 [shape = 'u32[]', space=smem, size = 0x4, offset = 0x4, fixed_abs, tag = 'smem constant byte address 0x4 - core index']
  #allocation1 [shape = 'u32[72,128]{1,0:T(1,128)}', space=vmem, size = 0x9000, scoped, tag = 'internal scratch']
  %s0 = inlined_call_operand.vmem [shape: f32[8,128], index: 0, kind: input, shape index: {}]
  %s1 = inlined_call_operand.vmem [shape: f32[8,128], index: 1, kind: input, shape index: {}, may-alias: {1,12}]
  %s2 = inlined_call_operand.hbm [shape: f32[128,128], index: 2, kind: input, shape index: {}]
  %s3 = inlined_call_operand.hbm [shape: f32[128,128], index: 3, kind: input, shape index: {}]
  %s4 = inlined_call_operand.vmem [shape: f32[1,128], index: 4, kind: input, shape index: {}]
  %s5 = inlined_call_operand.hbm [shape: f32[128,128], index: 5, kind: input, shape index: {}]
  %s6 = inlined_call_operand.hbm [shape: f32[128,128], index: 6, kind: input, shape index: {}]
  %s7 = inlined_call_operand.vmem [shape: f32[1,128], index: 7, kind: input, shape index: {}]
  %s8 = inlined_call_operand.hbm [shape: f32[128,128], index: 8, kind: input, shape index: {}]
  %s9 = inlined_call_operand.hbm [shape: f32[128,128], index: 9, kind: input, shape index: {}]
  %s10 = inlined_call_operand.vmem [shape: f32[1,128], index: 10, kind: input, shape index: {}]
  %s11 = inlined_call_operand.hbm [shape: f32[8,128], index: 11, kind: output, shape index: {0}]
  %s12 = inlined_call_operand.vmem [shape: f32[8,128], index: 12, kind: output, shape index: {1}, may-alias: {1,12}]
  %13 = xla_tuple %s11, %s12
  %s14 = sld [smem:[#allocation0]]
  $region86: #{_lambda_.1} parent=0
    _
  %s16 = ssub.s32 1, %s14
  %s17 = scalar_select 0, %s16, %s14
  $region1: #{_lambda_.1} parent=0
    #allocation2 [shape = 'u8[65536]{0}', space=vmem, size = 0x10000, scoped, tag = 'input window, operand 2, single buffered']
    #allocation3 [shape = 's32[1]{0}', space=sflag, size = 0x4, scoped, tag = 'scoped memory for _lambda_.1']
    #allocation4 [shape = 's32[1]{0}', space=sflag, size = 0x4, scoped, tag = 'scoped memory for _lambda_.1']
    #allocation5 [shape = 'u8[65536]{0}', space=vmem, size = 0x10000, scoped, tag = 'input window, operand 3, single buffered']
    #allocation6 [shape = 's32[1]{0}', space=sflag, size = 0x4, scoped, tag = 'scoped memory for _lambda_.1']
    #allocation7 [shape = 'u8[65536]{0}', space=vmem, size = 0x10000, scoped, tag = 'input window, operand 5, single buffered']
    #allocation8 [shape = 'u8[65536]{0}', space=vmem, size = 0x10000, scoped, tag = 'input window, operand 6, single buffered']
    #allocation9 [shape = 's32[1]{0}', space=sflag, size = 0x4, scoped, tag = 'scoped memory for _lambda_.1']
    #allocation10 [shape = 'u8[65536]{0}', space=vmem, size = 0x10000, scoped, tag = 'input window, operand 8, single buffered']
    #allocation11 [shape = 'u8[65536]{0}', space=vmem, size = 0x10000, scoped, tag = 'input window, operand 9, single buffered']
    #allocation12 [shape = 's32[1]{0}', space=sflag, size = 0x4, scoped, tag = 'scoped memory for _lambda_.1']
    #allocation13 [shape = 'u8[4096]{0}', space=vmem, size = 0x1000, scoped, tag = 'output window, operand 0, single buffered']
    %18 = vsyncpa [#allocation3], 0
    %19 = vsyncpa [#allocation6], 0
    %20 = vsyncpa [#allocation9], 0
    %21 = vsyncpa [#allocation12], 0
    %22 = vsyncpa [#allocation4], 0
    // Predicated region
    $region2: #{_lambda_.1} parent=1 // pred_check
      _
    $region3: #{_lambda_.1} parent=1 // pred_check_branch
      %24 = sbr.rel (0) target = $region5
    $region4: #{_lambda_.1} parent=1 // pred_region
      _
    $region5: #{_lambda_.1} parent=1 // pred_fallthru
      _
    // Predicated region
    $region6: #{_lambda_.1} parent=1 // pred_check
      _
    $region7: #{_lambda_.1} parent=1 // pred_check_branch
      %26 = sbr.rel (0) target = $region9
    $region8: #{_lambda_.1} parent=1 // pred_region
      _
    $region9: #{_lambda_.1} parent=1 // pred_fallthru
      _
    // Predicated region
    $region10: #{_lambda_.1} parent=1 // pred_check
      _
    $region11: #{_lambda_.1} parent=1 // pred_check_branch
      %28 = sbr.rel (0) target = $region13
    $region12: #{_lambda_.1} parent=1 // pred_region
      %30 = vsyncadd [#allocation3], 0
      %s31 = sshll.u32 %s2, 4
      %s32 = int_to_ptr.hbm [resolvable:$true] %s31
      %s33 = sshll.u32 [#allocation2], 4
      %s34 = int_to_ptr.vmem [resolvable:$true] %s33
      %39 = dma.hbm_to_vmem [thread:$0]  %s32, 2048, %s34, [#allocation3], 128, 128, 8
    $region13: #{_lambda_.1} parent=1 // pred_fallthru
      _
    // Predicated region
    $region14: #{_lambda_.1} parent=1 // pred_check
      _
    $region15: #{_lambda_.1} parent=1 // pred_check_branch
      %41 = sbr.rel (0) target = $region17
    $region16: #{_lambda_.1} parent=1 // pred_region
      %43 = vsyncadd [#allocation6], 0
      %s44 = sshll.u32 %s3, 4
      %s45 = int_to_ptr.hbm [resolvable:$true] %s44
      %s46 = sshll.u32 [#allocation5], 4
      %s47 = int_to_ptr.vmem [resolvable:$true] %s46
      %52 = dma.hbm_to_vmem [thread:$0]  %s45, 2048, %s47, [#allocation6], 128, 128, 8
    $region17: #{_lambda_.1} parent=1 // pred_fallthru
      _
    // Predicated region
    $region18: #{_lambda_.1} parent=1 // pred_check
      _
    $region19: #{_lambda_.1} parent=1 // pred_check_branch
      %54 = sbr.rel (0) target = $region21
    $region20: #{_lambda_.1} parent=1 // pred_region
      _
    $region21: #{_lambda_.1} parent=1 // pred_fallthru
      _
    // Predicated region
    $region22: #{_lambda_.1} parent=1 // pred_check
      _
    $region23: #{_lambda_.1} parent=1 // pred_check_branch
      %56 = sbr.rel (0) target = $region25
    $region24: #{_lambda_.1} parent=1 // pred_region
      %58 = vsyncadd [#allocation6], 0
      %s59 = sshll.u32 %s5, 4
      %s60 = int_to_ptr.hbm [resolvable:$true] %s59
      %s61 = sshll.u32 [#allocation7], 4
      %s62 = int_to_ptr.vmem [resolvable:$true] %s61
      %67 = dma.hbm_to_vmem [thread:$0]  %s60, 2048, %s62, [#allocation6], 128, 128, 8
    $region25: #{_lambda_.1} parent=1 // pred_fallthru
      _
    // Predicated region
    $region26: #{_lambda_.1} parent=1 // pred_check
      _
    $region27: #{_lambda_.1} parent=1 // pred_check_branch
      %69 = sbr.rel (0) target = $region29
    $region28: #{_lambda_.1} parent=1 // pred_region
      %71 = vsyncadd [#allocation9], 0
      %s72 = sshll.u32 %s6, 4
      %s73 = int_to_ptr.hbm [resolvable:$true] %s72
      %s74 = sshll.u32 [#allocation8], 4
      %s75 = int_to_ptr.vmem [resolvable:$true] %s74
      %80 = dma.hbm_to_vmem [thread:$0]  %s73, 2048, %s75, [#allocation9], 128, 128, 8
    $region29: #{_lambda_.1} parent=1 // pred_fallthru
      _
    // Predicated region
    $region30: #{_lambda_.1} parent=1 // pred_check
      _
    $region31: #{_lambda_.1} parent=1 // pred_check_branch
      %82 = sbr.rel (0) target = $region33
    $region32: #{_lambda_.1} parent=1 // pred_region
      _
    $region33: #{_lambda_.1} parent=1 // pred_fallthru
      _
    // Predicated region
    $region34: #{_lambda_.1} parent=1 // pred_check
      _
    $region35: #{_lambda_.1} parent=1 // pred_check_branch
      %84 = sbr.rel (0) target = $region37
    $region36: #{_lambda_.1} parent=1 // pred_region
      %86 = vsyncadd [#allocation9], 0
      %s87 = sshll.u32 %s8, 4
      %s88 = int_to_ptr.hbm [resolvable:$true] %s87
      %s89 = sshll.u32 [#allocation10], 4
      %s90 = int_to_ptr.vmem [resolvable:$true] %s89
      %95 = dma.hbm_to_vmem [thread:$0]  %s88, 2048, %s90, [#allocation9], 128, 128, 8
    $region37: #{_lambda_.1} parent=1 // pred_fallthru
      _
    // Predicated region
    $region38: #{_lambda_.1} parent=1 // pred_check
      _
    $region39: #{_lambda_.1} parent=1 // pred_check_branch
      %97 = sbr.rel (0) target = $region41
    $region40: #{_lambda_.1} parent=1 // pred_region
      %99 = vsyncadd [#allocation12], 0
      %s100 = sshll.u32 %s9, 4
      %s101 = int_to_ptr.hbm [resolvable:$true] %s100
      %s102 = sshll.u32 [#allocation11], 4
      %s103 = int_to_ptr.vmem [resolvable:$true] %s102
      %108 = dma.hbm_to_vmem [thread:$0]  %s101, 2048, %s103, [#allocation12], 128, 128, 8
    $region41: #{_lambda_.1} parent=1 // pred_fallthru
      _
    // Predicated region
    $region42: #{_lambda_.1} parent=1 // pred_check
      _
    $region43: #{_lambda_.1} parent=1 // pred_check_branch
      %110 = sbr.rel (0) target = $region45
    $region44: #{_lambda_.1} parent=1 // pred_region
      _
    $region45: #{_lambda_.1} parent=1 // pred_fallthru
      _
    // Predicated region
    $region46: #{_lambda_.1} parent=1 // pred_check
      _
    $region47: #{_lambda_.1} parent=1 // pred_check_branch
      %112 = sbr.rel (0) target = $region49
    $region48: #{_lambda_.1} parent=1 // pred_region
      %114 = dma.done [#allocation3], 2048
    $region49: #{_lambda_.1} parent=1 // pred_fallthru
      _
    // Predicated region
    $region50: #{_lambda_.1} parent=1 // pred_check
      _
    $region51: #{_lambda_.1} parent=1 // pred_check_branch
      %116 = sbr.rel (0) target = $region53
    $region52: #{_lambda_.1} parent=1 // pred_region
      %118 = dma.done [#allocation6], 2048
    $region53: #{_lambda_.1} parent=1 // pred_fallthru
      _
    // Predicated region
    $region54: #{_lambda_.1} parent=1 // pred_check
      _
    $region55: #{_lambda_.1} parent=1 // pred_check_branch
      %120 = sbr.rel (0) target = $region57
    $region56: #{_lambda_.1} parent=1 // pred_region
      %122 = dma.done [#allocation6], 2048
    $region57: #{_lambda_.1} parent=1 // pred_fallthru
      _
    // Predicated region
    $region58: #{_lambda_.1} parent=1 // pred_check
      _
    $region59: #{_lambda_.1} parent=1 // pred_check_branch
      %124 = sbr.rel (0) target = $region61
    $region60: #{_lambda_.1} parent=1 // pred_region
      %126 = dma.done [#allocation9], 2048
    $region61: #{_lambda_.1} parent=1 // pred_fallthru
      _
    // Predicated region
    $region62: #{_lambda_.1} parent=1 // pred_check
      _
    $region63: #{_lambda_.1} parent=1 // pred_check_branch
      %128 = sbr.rel (0) target = $region65
    $region64: #{_lambda_.1} parent=1 // pred_region
      %130 = dma.done [#allocation9], 2048
    $region65: #{_lambda_.1} parent=1 // pred_fallthru
      _
    // Predicated region
    $region66: #{_lambda_.1} parent=1 // pred_check
      _
    $region67: #{_lambda_.1} parent=1 // pred_check_branch
      %132 = sbr.rel (0) target = $region69
    $region68: #{_lambda_.1} parent=1 // pred_region
      %134 = dma.done [#allocation12], 2048
    $region69: #{_lambda_.1} parent=1 // pred_fallthru
      _
    %v135 = vld [vmem:[%s0] sm:$0xff]
    %v136 = vld [vmem:[%s1] sm:$0xff]
    %v137 = vld [vmem:[#allocation2] sm:$0xff]
    %v138 = vld [vmem:[#allocation2 + $0x8] sm:$0xff]
    %v139 = vld [vmem:[#allocation2 + $0x10] sm:$0xff]
    %v140 = vld [vmem:[#allocation2 + $0x18] sm:$0xff]
    %v141 = vld [vmem:[#allocation2 + $0x20] sm:$0xff]
    %v142 = vld [vmem:[#allocation2 + $0x28] sm:$0xff]
    %v143 = vld [vmem:[#allocation2 + $0x30] sm:$0xff]
    %v144 = vld [vmem:[#allocation2 + $0x38] sm:$0xff]
    %v145 = vld [vmem:[#allocation2 + $0x40] sm:$0xff]
    %v146 = vld [vmem:[#allocation2 + $0x48] sm:$0xff]
    %v147 = vld [vmem:[#allocation2 + $0x50] sm:$0xff]
    %v148 = vld [vmem:[#allocation2 + $0x58] sm:$0xff]
    %v149 = vld [vmem:[#allocation2 + $0x60] sm:$0xff]
    %v150 = vld [vmem:[#allocation2 + $0x68] sm:$0xff]
    %v151 = vld [vmem:[#allocation2 + $0x70] sm:$0xff]
    %v152 = vld [vmem:[#allocation2 + $0x78] sm:$0xff]
    %v153 = vld [vmem:[#allocation5] sm:$0xff]
    %v154 = vld [vmem:[#allocation5 + $0x8] sm:$0xff]
    %v155 = vld [vmem:[#allocation5 + $0x10] sm:$0xff]
    %v156 = vld [vmem:[#allocation5 + $0x18] sm:$0xff]
    %v157 = vld [vmem:[#allocation5 + $0x20] sm:$0xff]
    %v158 = vld [vmem:[#allocation5 + $0x28] sm:$0xff]
    %v159 = vld [vmem:[#allocation5 + $0x30] sm:$0xff]
    %v160 = vld [vmem:[#allocation5 + $0x38] sm:$0xff]
    %v161 = vld [vmem:[#allocation5 + $0x40] sm:$0xff]
    %v162 = vld [vmem:[#allocation5 + $0x48] sm:$0xff]
    %v163 = vld [vmem:[#allocation5 + $0x50] sm:$0xff]
    %v164 = vld [vmem:[#allocation5 + $0x58] sm:$0xff]
    %v165 = vld [vmem:[#allocation5 + $0x60] sm:$0xff]
    %v166 = vld [vmem:[#allocation5 + $0x68] sm:$0xff]
    %v167 = vld [vmem:[#allocation5 + $0x70] sm:$0xff]
    %v168 = vld [vmem:[#allocation5 + $0x78] sm:$0xff]
    %169 = vmatpush.msra.mxu0 %v168
    %170 = vmatpush.msra.mxu0 %v167
    %171 = vmatpush.msra.mxu0 %v166
    %172 = vmatpush.msra.mxu0 %v165
    %173 = vmatpush.msra.mxu0 %v164
    %174 = vmatpush.msra.mxu0 %v163
    %175 = vmatpush.msra.mxu0 %v162
    %176 = vmatpush.msra.mxu0 %v161
    %177 = vmatpush.msra.mxu0 %v160
    %178 = vmatpush.msra.mxu0 %v159
    %179 = vmatpush.msra.mxu0 %v158
    %180 = vmatpush.msra.mxu0 %v157
    %181 = vmatpush.msra.mxu0 %v156
    %182 = vmatpush.msra.mxu0 %v155
    %183 = vmatpush.msra.mxu0 %v154
    %184 = vmatpush.msra.mxu0 %v153
    %185 = vmatmul.f32.gmra.mxu0 %v136
    %v186 = vpop.f32.mrf.mxu0
    %v187 = vadd.f32 0.0, %v186
    %188 = vdwg.mxu0
    %189 = vmatpush.msra.mxu0 %v152
    %190 = vmatpush.msra.mxu0 %v151
    %191 = vmatpush.msra.mxu0 %v150
    %192 = vmatpush.msra.mxu0 %v149
    %193 = vmatpush.msra.mxu0 %v148
    %194 = vmatpush.msra.mxu0 %v147
    %195 = vmatpush.msra.mxu0 %v146
    %196 = vmatpush.msra.mxu0 %v145
    %197 = vmatpush.msra.mxu0 %v144
    %198 = vmatpush.msra.mxu0 %v143
    %199 = vmatpush.msra.mxu0 %v142
    %200 = vmatpush.msra.mxu0 %v141
    %201 = vmatpush.msra.mxu0 %v140
    %202 = vmatpush.msra.mxu0 %v139
    %203 = vmatpush.msra.mxu0 %v138
    %204 = vmatpush.msra.mxu0 %v137
    %205 = vmatmul.f32.gmra.mxu0 %v135
    %v206 = vpop.f32.mrf.mxu0
    %v207 = vadd.f32 %v187, %v206
    %208 = vdwg.mxu0
    %v209 = vld [vmem:[%s4] sm:$0x1]
    %v211 = vperm.slane %v209, 0
    %v213 = vadd.f32 %v207, %v211
    %v214 = vld [vmem:[#allocation7] sm:$0xff]
    %v215 = vld [vmem:[#allocation7 + $0x8] sm:$0xff]
    %v216 = vld [vmem:[#allocation7 + $0x10] sm:$0xff]
    %v217 = vld [vmem:[#allocation7 + $0x18] sm:$0xff]
    %v218 = vld [vmem:[#allocation7 + $0x20] sm:$0xff]
    %v219 = vld [vmem:[#allocation7 + $0x28] sm:$0xff]
    %v220 = vld [vmem:[#allocation7 + $0x30] sm:$0xff]
    %v221 = vld [vmem:[#allocation7 + $0x38] sm:$0xff]
    %v222 = vld [vmem:[#allocation7 + $0x40] sm:$0xff]
    %v223 = vld [vmem:[#allocation7 + $0x48] sm:$0xff]
    %v224 = vld [vmem:[#allocation7 + $0x50] sm:$0xff]
    %v225 = vld [vmem:[#allocation7 + $0x58] sm:$0xff]
    %v226 = vld [vmem:[#allocation7 + $0x60] sm:$0xff]
    %v227 = vld [vmem:[#allocation7 + $0x68] sm:$0xff]
    %v228 = vld [vmem:[#allocation7 + $0x70] sm:$0xff]
    %v229 = vld [vmem:[#allocation7 + $0x78] sm:$0xff]
    %v230 = vld [vmem:[#allocation8] sm:$0xff]
    %v231 = vld [vmem:[#allocation8 + $0x8] sm:$0xff]
    %v232 = vld [vmem:[#allocation8 + $0x10] sm:$0xff]
    %v233 = vld [vmem:[#allocation8 + $0x18] sm:$0xff]
    %v234 = vld [vmem:[#allocation8 + $0x20] sm:$0xff]
    %v235 = vld [vmem:[#allocation8 + $0x28] sm:$0xff]
    %v236 = vld [vmem:[#allocation8 + $0x30] sm:$0xff]
    %v237 = vld [vmem:[#allocation8 + $0x38] sm:$0xff]
    %v238 = vld [vmem:[#allocation8 + $0x40] sm:$0xff]
    %v239 = vld [vmem:[#allocation8 + $0x48] sm:$0xff]
    %v240 = vld [vmem:[#allocation8 + $0x50] sm:$0xff]
    %v241 = vld [vmem:[#allocation8 + $0x58] sm:$0xff]
    %v242 = vld [vmem:[#allocation8 + $0x60] sm:$0xff]
    %v243 = vld [vmem:[#allocation8 + $0x68] sm:$0xff]
    %v244 = vld [vmem:[#allocation8 + $0x70] sm:$0xff]
    %v245 = vld [vmem:[#allocation8 + $0x78] sm:$0xff]
    %246 = vmatpush.msra.mxu0 %v245
    %247 = vmatpush.msra.mxu0 %v244
    %248 = vmatpush.msra.mxu0 %v243
    %249 = vmatpush.msra.mxu0 %v242
    %250 = vmatpush.msra.mxu0 %v241
    %251 = vmatpush.msra.mxu0 %v240
    %252 = vmatpush.msra.mxu0 %v239
    %253 = vmatpush.msra.mxu0 %v238
    %254 = vmatpush.msra.mxu0 %v237
    %255 = vmatpush.msra.mxu0 %v236
    %256 = vmatpush.msra.mxu0 %v235
    %257 = vmatpush.msra.mxu0 %v234
    %258 = vmatpush.msra.mxu0 %v233
    %259 = vmatpush.msra.mxu0 %v232
    %260 = vmatpush.msra.mxu0 %v231
    %261 = vmatpush.msra.mxu0 %v230
    %262 = vmatmul.f32.gmra.mxu0 %v136
    %v263 = vpop.f32.mrf.mxu0
    %v264 = vadd.f32 0.0, %v263
    %265 = vdwg.mxu0
    %266 = vmatpush.msra.mxu0 %v229
    %267 = vmatpush.msra.mxu0 %v228
    %268 = vmatpush.msra.mxu0 %v227
    %269 = vmatpush.msra.mxu0 %v226
    %270 = vmatpush.msra.mxu0 %v225
    %271 = vmatpush.msra.mxu0 %v224
    %272 = vmatpush.msra.mxu0 %v223
    %273 = vmatpush.msra.mxu0 %v222
    %274 = vmatpush.msra.mxu0 %v221
    %275 = vmatpush.msra.mxu0 %v220
    %276 = vmatpush.msra.mxu0 %v219
    %277 = vmatpush.msra.mxu0 %v218
    %278 = vmatpush.msra.mxu0 %v217
    %279 = vmatpush.msra.mxu0 %v216
    %280 = vmatpush.msra.mxu0 %v215
    %281 = vmatpush.msra.mxu0 %v214
    %282 = vmatmul.f32.gmra.mxu0 %v135
    %v283 = vpop.f32.mrf.mxu0
    %v284 = vadd.f32 %v264, %v283
    %285 = vdwg.mxu0
    %v286 = vld [vmem:[%s7] sm:$0x1]
    %v288 = vperm.slane %v286, 0
    %v290 = vadd.f32 %v284, %v288
    %v291 = vld [vmem:[#allocation10] sm:$0xff]
    %v292 = vld [vmem:[#allocation10 + $0x8] sm:$0xff]
    %v293 = vld [vmem:[#allocation10 + $0x10] sm:$0xff]
    %v294 = vld [vmem:[#allocation10 + $0x18] sm:$0xff]
    %v295 = vld [vmem:[#allocation10 + $0x20] sm:$0xff]
    %v296 = vld [vmem:[#allocation10 + $0x28] sm:$0xff]
    %v297 = vld [vmem:[#allocation10 + $0x30] sm:$0xff]
    %v298 = vld [vmem:[#allocation10 + $0x38] sm:$0xff]
    %v299 = vld [vmem:[#allocation10 + $0x40] sm:$0xff]
    %v300 = vld [vmem:[#allocation10 + $0x48] sm:$0xff]
    %v301 = vld [vmem:[#allocation10 + $0x50] sm:$0xff]
    %v302 = vld [vmem:[#allocation10 + $0x58] sm:$0xff]
    %v303 = vld [vmem:[#allocation10 + $0x60] sm:$0xff]
    %v304 = vld [vmem:[#allocation10 + $0x68] sm:$0xff]
    %v305 = vld [vmem:[#allocation10 + $0x70] sm:$0xff]
    %v306 = vld [vmem:[#allocation10 + $0x78] sm:$0xff]
    %v307 = vld [vmem:[#allocation11] sm:$0xff]
    %v308 = vld [vmem:[#allocation11 + $0x8] sm:$0xff]
    %v309 = vld [vmem:[#allocation11 + $0x10] sm:$0xff]
    %v310 = vld [vmem:[#allocation11 + $0x18] sm:$0xff]
    %v311 = vld [vmem:[#allocation11 + $0x20] sm:$0xff]
    %v312 = vld [vmem:[#allocation11 + $0x28] sm:$0xff]
    %v313 = vld [vmem:[#allocation11 + $0x30] sm:$0xff]
    %v314 = vld [vmem:[#allocation11 + $0x38] sm:$0xff]
    %v315 = vld [vmem:[#allocation11 + $0x40] sm:$0xff]
    %v316 = vld [vmem:[#allocation11 + $0x48] sm:$0xff]
    %v317 = vld [vmem:[#allocation11 + $0x50] sm:$0xff]
    %v318 = vld [vmem:[#allocation11 + $0x58] sm:$0xff]
    %v319 = vld [vmem:[#allocation11 + $0x60] sm:$0xff]
    %v320 = vld [vmem:[#allocation11 + $0x68] sm:$0xff]
    %v321 = vld [vmem:[#allocation11 + $0x70] sm:$0xff]
    %v322 = vld [vmem:[#allocation11 + $0x78] sm:$0xff]
    %323 = vmatpush.msra.mxu0 %v322
    %324 = vmatpush.msra.mxu0 %v321
    %325 = vmatpush.msra.mxu0 %v320
    %326 = vmatpush.msra.mxu0 %v319
    %327 = vmatpush.msra.mxu0 %v318
    %328 = vmatpush.msra.mxu0 %v317
    %329 = vmatpush.msra.mxu0 %v316
    %330 = vmatpush.msra.mxu0 %v315
    %331 = vmatpush.msra.mxu0 %v314
    %332 = vmatpush.msra.mxu0 %v313
    %333 = vmatpush.msra.mxu0 %v312
    %334 = vmatpush.msra.mxu0 %v311
    %335 = vmatpush.msra.mxu0 %v310
    %336 = vmatpush.msra.mxu0 %v309
    %337 = vmatpush.msra.mxu0 %v308
    %338 = vmatpush.msra.mxu0 %v307
    %339 = vmatmul.f32.gmra.mxu0 %v290
    %v340 = vpop.f32.mrf.mxu0
    %v341 = vadd.f32 0.0, %v340
    %342 = vdwg.mxu0
    %343 = vmatpush.msra.mxu0 %v306
    %344 = vmatpush.msra.mxu0 %v305
    %345 = vmatpush.msra.mxu0 %v304
    %346 = vmatpush.msra.mxu0 %v303
    %347 = vmatpush.msra.mxu0 %v302
    %348 = vmatpush.msra.mxu0 %v301
    %349 = vmatpush.msra.mxu0 %v300
    %350 = vmatpush.msra.mxu0 %v299
    %351 = vmatpush.msra.mxu0 %v298
    %352 = vmatpush.msra.mxu0 %v297
    %353 = vmatpush.msra.mxu0 %v296
    %354 = vmatpush.msra.mxu0 %v295
    %355 = vmatpush.msra.mxu0 %v294
    %356 = vmatpush.msra.mxu0 %v293
    %357 = vmatpush.msra.mxu0 %v292
    %358 = vmatpush.msra.mxu0 %v291
    %359 = vmatmul.f32.gmra.mxu0 %v213
    %v360 = vpop.f32.mrf.mxu0
    %v361 = vadd.f32 %v341, %v360
    %362 = vdwg.mxu0
    %v363 = vld [vmem:[%s10] sm:$0x1]
    %v365 = vperm.slane %v363, 0
    %v367 = vadd.f32 %v361, %v365
    %368 = vmax.xlane.f32.xlu0 %v367
    %v369 = vpop.xlane.xlu0 %368
    %v370 = vsub.f32 %v367, %v369
    %v371 = vmul.f32 %v370, 1.442695
    %v372 = vpow.pop %v371
    %373 = vadd.xlane.f32.xlu0 %v372
    %v374 = vpop.xlane.xlu0 %373
    %v375 = vlog2.pop %v374
    %v376 = vmul.f32 %v375, 0.6931472
    %v377 = vsub.f32 %v370, %v376
    %378 = vst [vmem:[#allocation13] sm:$0xff] %v377
    %379 = vst [vmem:[%s12] sm:$0xff] %v213
    // Predicated region
    $region70: #{_lambda_.1} parent=1 // pred_check
      _
    $region71: #{_lambda_.1} parent=1 // pred_check_branch
      %381 = sbr.rel (0) target = $region73
    $region72: #{_lambda_.1} parent=1 // pred_region
      %383 = vsyncadd [#allocation4], 0
      %s385 = sshll.u32 [#allocation13], 4
      %s386 = int_to_ptr.vmem [resolvable:$true] %s385
      %s387 = sshll.u32 %s11, 4
      %s388 = int_to_ptr.hbm [resolvable:$true] %s387
      %390 = dma.vmem_to_hbm [thread:$0]  %s386, 128, %s388, [#allocation4]
    $region73: #{_lambda_.1} parent=1 // pred_fallthru
      _
    // Predicated region
    $region74: #{_lambda_.1} parent=1 // pred_check
      _
    $region75: #{_lambda_.1} parent=1 // pred_check_branch
      %392 = sbr.rel (0) target = $region77
    $region76: #{_lambda_.1} parent=1 // pred_region
      _
    $region77: #{_lambda_.1} parent=1 // pred_fallthru
      _
    // Predicated region
    $region78: #{_lambda_.1} parent=1 // pred_check
      _
    $region79: #{_lambda_.1} parent=1 // pred_check_branch
      %394 = sbr.rel (0) target = $region81
    $region80: #{_lambda_.1} parent=1 // pred_region
      %396 = dma.done [#allocation4], 128
    $region81: #{_lambda_.1} parent=1 // pred_fallthru
      _
    // Predicated region
    $region82: #{_lambda_.1} parent=1 // pred_check
      _
    $region83: #{_lambda_.1} parent=1 // pred_check_branch
      %398 = sbr.rel (0) target = $region85
    $region84: #{_lambda_.1} parent=1 // pred_region
      _
    $region85: #{_lambda_.1} parent=1 // pred_fallthru
      _
    %399 = vsyncpa [#allocation3], 1
    %400 = vsyncpa [#allocation6], 1
    %401 = vsyncpa [#allocation9], 1
    %402 = vsyncpa [#allocation12], 1
    %403 = vsyncpa [#allocation4], 1

</llo_original>
